<compile_context>
chip_gen: v7x
topology: tpu7x:2x2x1
jax: 0.10.0
libtpu: 0.0.40
codegen_flags: <defaults>
</compile_context>

<pallas_src>
import functools

import jax
import jax.numpy as jnp
from jax.experimental import pallas as pl
from jax.experimental.pallas import tpu as pltpu

_SUBLANE = 8


def _round_up(x, m):
    return ((x + m - 1) // m) * m


def _mlp_kernel(x_ref, w1_ref, b1_ref, w2_ref, b2_ref, w3_ref, b3_ref,
                w4_ref, b4_ref, o_ref):
    """Fused 4-layer MLP + ReLU + log_softmax; intermediates never leave VMEM."""
    x = x_ref[...]

    h = jnp.dot(x, w1_ref[...], preferred_element_type=jnp.float32) + b1_ref[...]
    h = jnp.maximum(h, 0.0)

    h = jnp.dot(h, w2_ref[...], preferred_element_type=jnp.float32) + b2_ref[...]
    h = jnp.maximum(h, 0.0)

    h = jnp.dot(h, w3_ref[...], preferred_element_type=jnp.float32) + b3_ref[...]
    h = jnp.maximum(h, 0.0)

    logits = jnp.dot(h, w4_ref[...], preferred_element_type=jnp.float32) + b4_ref[...]

    # Numerically stable log_softmax over dim=1 (the class axis). Row-local,
    # so garbage rows in a ragged last batch tile cannot leak into valid rows.
    m = jnp.max(logits, axis=-1, keepdims=True)
    shifted = logits - m
    lse = jnp.log(jnp.sum(jnp.exp(shifted), axis=-1, keepdims=True))
    o_ref[...] = (shifted - lse).astype(o_ref.dtype)


@functools.partial(jax.jit, static_argnames=("block_b",))
def net_forward(x, params, block_b=1024):
    """x: (B, 784) float32. params: w1..w4 as (in, out), b1..b4 as (1, out)."""
    B, D = x.shape

    w1, b1 = params["w1"], params["b1"]
    w2, b2 = params["w2"], params["b2"]
    w3, b3 = params["w3"], params["b3"]
    w4, b4 = params["w4"], params["b4"]
    n_hidden = w1.shape[1]
    n_out = w4.shape[1]

    # Batch tile: big tiles for real batches, clamped to the (sublane-rounded)
    # batch so tiny batches stay tiny. No padding of x — the last grid block
    # may be ragged; Pallas clips the output writeback for OOB rows.
    bb = _round_up(max(_SUBLANE, min(block_b, B)), _SUBLANE)
    # Give the v7x megacore (2 TCs on the 'parallel' axis) at least 2 grid
    # steps when the batch is big enough to be worth splitting.
    if B > 4 * _SUBLANE and pl.cdiv(B, bb) < 2:
        bb = _round_up(pl.cdiv(B, 2), _SUBLANE)

    grid = (pl.cdiv(B, bb),)

    # x streamed per batch tile; full-extent (unpadded) K=784 last dim.
    x_spec = pl.BlockSpec((bb, D), lambda i: (i, 0))

    # Weights/biases: constant index map -> fetched once, resident in VMEM.
    def rep(shape):
        return pl.BlockSpec(shape, lambda i: (0,) * len(shape))

    flops = 2 * B * (D * n_hidden + 2 * n_hidden * n_hidden + n_hidden * n_out)
    bytes_accessed = (
        B * (D + n_out) * 4
        + sum(int(p.size) * 4 for p in (w1, b1, w2, b2, w3, b3, w4, b4)))
    cost = pl.CostEstimate(flops=int(flops),
                           transcendentals=int(B * (n_out + 1)),
                           bytes_accessed=int(bytes_accessed))

    out = pl.pallas_call(
        _mlp_kernel,
        out_shape=jax.ShapeDtypeStruct((B, n_out), jnp.float32),
        grid_spec=pltpu.PrefetchScalarGridSpec(
            num_scalar_prefetch=0,
            grid=grid,
            in_specs=[
                x_spec,
                rep(w1.shape), rep(b1.shape),
                rep(w2.shape), rep(b2.shape),
                rep(w3.shape), rep(b3.shape),
                rep(w4.shape), rep(b4.shape),
            ],
            out_specs=pl.BlockSpec((bb, n_out), lambda i: (i, 0)),
        ),
        compiler_params=pltpu.CompilerParams(
            dimension_semantics=("parallel",),
            vmem_limit_bytes=48 * 1024 * 1024),
        cost_estimate=cost,
    )(x, w1, b1, w2, b2, w3, b3, w4, b4)

    return out


def init_params(key):
    """Deterministic init mimicking PyTorch nn.Linear default U[-1/sqrt(in), 1/sqrt(in)]."""
    dims = [(28 * 28, 64), (64, 64), (64, 64), (64, 10)]
    params = {}
    for idx, (fan_in, fan_out) in enumerate(dims, start=1):
        key, kw, kb = jax.random.split(key, 3)
        bound = 1.0 / (fan_in ** 0.5)
        params[f"w{idx}"] = jax.random.uniform(
            kw, (fan_in, fan_out), jnp.float32, minval=-bound, maxval=bound)
        params[f"b{idx}"] = jax.random.uniform(
            kb, (1, fan_out), jnp.float32, minval=-bound, maxval=bound)
    return params


def reference_forward(x, params):
    h = jnp.maximum(x @ params["w1"] + params["b1"], 0.0)
    h = jnp.maximum(h @ params["w2"] + params["b2"], 0.0)
    h = jnp.maximum(h @ params["w3"] + params["b3"], 0.0)
    logits = h @ params["w4"] + params["b4"]
    return jax.nn.log_softmax(logits, axis=1)


if __name__ == "__main__":
    key = jax.random.PRNGKey(0)
    k_params, k_x1, k_x2 = jax.random.split(key, 3)

    params = init_params(k_params)

    # Small smoke test: single-tile path.
    x_small = jax.random.normal(k_x1, (8, 28 * 28), dtype=jnp.float32)
    out_small = jax.block_until_ready(net_forward(x_small, params))
    ref_small = reference_forward(x_small, params)
    assert out_small.shape == (8, 10)
    assert jnp.allclose(out_small, ref_small, atol=1e-5, rtol=1e-5)

    # Multi-tile test: batch not a multiple of the tile (ragged last block).
    x_big = jax.random.normal(k_x2, (150, 28 * 28), dtype=jnp.float32)
    out_big = jax.block_until_ready(net_forward(x_big, params, block_b=32))
    ref_big = reference_forward(x_big, params)
    assert out_big.shape == (150, 10)
    assert jnp.allclose(out_big, ref_big, atol=1e-5, rtol=1e-5)

    # Default tile path (exercises the >=2-grid-step clamp for bigger batches).
    out_def = jax.block_until_ready(net_forward(x_big, params))
    assert out_def.shape == (150, 10)
    assert jnp.allclose(out_def, ref_big, atol=1e-5, rtol=1e-5)

    print("KERNEL_OK")
</pallas_src>

<mosaic_0001>
module attributes {stable_mosaic.version = 11 : i64} {
  func.func @_mlp_kernel(%arg0: i32, %arg1: memref<8x784xf32, #tpu.memory_space<vmem>>, %arg2: memref<784x64xf32, #tpu.memory_space<vmem>>, %arg3: memref<1x64xf32, #tpu.memory_space<vmem>>, %arg4: memref<64x64xf32, #tpu.memory_space<vmem>>, %arg5: memref<1x64xf32, #tpu.memory_space<vmem>>, %arg6: memref<64x64xf32, #tpu.memory_space<vmem>>, %arg7: memref<1x64xf32, #tpu.memory_space<vmem>>, %arg8: memref<64x10xf32, #tpu.memory_space<vmem>>, %arg9: memref<1x10xf32, #tpu.memory_space<vmem>>, %arg10: memref<8x10xf32, #tpu.memory_space<vmem>>) attributes {dimension_semantics = [#tpu.dimension_semantics<parallel>], iteration_bounds = array<i64: 1>, scalar_prefetch = 0 : i64, scratch_operands = 0 : i64, tpu.core_type = #tpu.core_type<tc>, window_params = [{transform_indices = @transform_0, window_bounds = array<i64: 8, 784>}, {pipeline_mode = #tpu.pipeline_mode<synchronous>, transform_indices = @transform_1, window_bounds = array<i64: 784, 64>}, {pipeline_mode = #tpu.pipeline_mode<synchronous>, transform_indices = @transform_2, window_bounds = array<i64: 1, 64>}, {pipeline_mode = #tpu.pipeline_mode<synchronous>, transform_indices = @transform_3, window_bounds = array<i64: 64, 64>}, {pipeline_mode = #tpu.pipeline_mode<synchronous>, transform_indices = @transform_4, window_bounds = array<i64: 1, 64>}, {pipeline_mode = #tpu.pipeline_mode<synchronous>, transform_indices = @transform_5, window_bounds = array<i64: 64, 64>}, {pipeline_mode = #tpu.pipeline_mode<synchronous>, transform_indices = @transform_6, window_bounds = array<i64: 1, 64>}, {pipeline_mode = #tpu.pipeline_mode<synchronous>, transform_indices = @transform_7, window_bounds = array<i64: 64, 10>}, {pipeline_mode = #tpu.pipeline_mode<synchronous>, transform_indices = @transform_8, window_bounds = array<i64: 1, 10>}, {transform_indices = @transform_9, window_bounds = array<i64: 8, 10>}]} {
    %c0 = arith.constant 0 : index
    %c0_0 = arith.constant 0 : index
    %0 = vector.load %arg1[%c0, %c0_0] : memref<8x784xf32, #tpu.memory_space<vmem>>, vector<8x784xf32>
    %c0_1 = arith.constant 0 : index
    %c0_2 = arith.constant 0 : index
    %1 = vector.load %arg2[%c0_1, %c0_2] : memref<784x64xf32, #tpu.memory_space<vmem>>, vector<784x64xf32>
    %cst = arith.constant dense<0.000000e+00> : vector<8x64xf32>
    %2 = tpu.matmul %0, %1, %cst {dimension_numbers = #tpu.dot_dimension_numbers<[1], [0], [0], [1], [0, 0, 1, 1], [], []>} : vector<8x784xf32>, vector<784x64xf32>, vector<8x64xf32> -> vector<8x64xf32>
    %c0_3 = arith.constant 0 : index
    %c0_4 = arith.constant 0 : index
    %3 = vector.load %arg3[%c0_3, %c0_4] : memref<1x64xf32, #tpu.memory_space<vmem>>, vector<1x64xf32>
    %4 = vector.broadcast %3 : vector<1x64xf32> to vector<8x64xf32>
    %5 = arith.addf %2, %4 : vector<8x64xf32>
    %cst_5 = arith.constant 0.000000e+00 : f32
    %6 = vector.broadcast %cst_5 : f32 to vector<8x64xf32>
    %7 = arith.maximumf %5, %6 : vector<8x64xf32>
    %c0_6 = arith.constant 0 : index
    %c0_7 = arith.constant 0 : index
    %8 = vector.load %arg4[%c0_6, %c0_7] : memref<64x64xf32, #tpu.memory_space<vmem>>, vector<64x64xf32>
    %cst_8 = arith.constant dense<0.000000e+00> : vector<8x64xf32>
    %9 = tpu.matmul %7, %8, %cst_8 {dimension_numbers = #tpu.dot_dimension_numbers<[1], [0], [0], [1], [0, 0, 1, 1], [], []>} : vector<8x64xf32>, vector<64x64xf32>, vector<8x64xf32> -> vector<8x64xf32>
    %c0_9 = arith.constant 0 : index
    %c0_10 = arith.constant 0 : index
    %10 = vector.load %arg5[%c0_9, %c0_10] : memref<1x64xf32, #tpu.memory_space<vmem>>, vector<1x64xf32>
    %11 = vector.broadcast %10 : vector<1x64xf32> to vector<8x64xf32>
    %12 = arith.addf %9, %11 : vector<8x64xf32>
    %cst_11 = arith.constant 0.000000e+00 : f32
    %13 = vector.broadcast %cst_11 : f32 to vector<8x64xf32>
    %14 = arith.maximumf %12, %13 : vector<8x64xf32>
    %c0_12 = arith.constant 0 : index
    %c0_13 = arith.constant 0 : index
    %15 = vector.load %arg6[%c0_12, %c0_13] : memref<64x64xf32, #tpu.memory_space<vmem>>, vector<64x64xf32>
    %cst_14 = arith.constant dense<0.000000e+00> : vector<8x64xf32>
    %16 = tpu.matmul %14, %15, %cst_14 {dimension_numbers = #tpu.dot_dimension_numbers<[1], [0], [0], [1], [0, 0, 1, 1], [], []>} : vector<8x64xf32>, vector<64x64xf32>, vector<8x64xf32> -> vector<8x64xf32>
    %c0_15 = arith.constant 0 : index
    %c0_16 = arith.constant 0 : index
    %17 = vector.load %arg7[%c0_15, %c0_16] : memref<1x64xf32, #tpu.memory_space<vmem>>, vector<1x64xf32>
    %18 = vector.broadcast %17 : vector<1x64xf32> to vector<8x64xf32>
    %19 = arith.addf %16, %18 : vector<8x64xf32>
    %cst_17 = arith.constant 0.000000e+00 : f32
    %20 = vector.broadcast %cst_17 : f32 to vector<8x64xf32>
    %21 = arith.maximumf %19, %20 : vector<8x64xf32>
    %c0_18 = arith.constant 0 : index
    %c0_19 = arith.constant 0 : index
    %22 = vector.load %arg8[%c0_18, %c0_19] : memref<64x10xf32, #tpu.memory_space<vmem>>, vector<64x10xf32>
    %cst_20 = arith.constant dense<0.000000e+00> : vector<8x10xf32>
    %23 = tpu.matmul %21, %22, %cst_20 {dimension_numbers = #tpu.dot_dimension_numbers<[1], [0], [0], [1], [0, 0, 1, 1], [], []>} : vector<8x64xf32>, vector<64x10xf32>, vector<8x10xf32> -> vector<8x10xf32>
    %c0_21 = arith.constant 0 : index
    %c0_22 = arith.constant 0 : index
    %24 = vector.load %arg9[%c0_21, %c0_22] : memref<1x10xf32, #tpu.memory_space<vmem>>, vector<1x10xf32>
    %25 = vector.broadcast %24 : vector<1x10xf32> to vector<8x10xf32>
    %26 = arith.addf %23, %25 : vector<8x10xf32>
    %cst_23 = arith.constant dense<0xFF800000> : vector<8xf32>
    %27 = vector.multi_reduction <maximumf>, %26, %cst_23 [1] : vector<8x10xf32> to vector<8xf32>
    %28 = vector.shape_cast %27 : vector<8xf32> to vector<8x1xf32>
    %29 = vector.broadcast %28 : vector<8x1xf32> to vector<8x10xf32>
    %30 = arith.subf %26, %29 : vector<8x10xf32>
    %31 = math.exp %30 : vector<8x10xf32>
    %cst_24 = arith.constant dense<0.000000e+00> : vector<8xf32>
    %32 = vector.multi_reduction <add>, %31, %cst_24 [1] : vector<8x10xf32> to vector<8xf32>
    %33 = vector.shape_cast %32 : vector<8xf32> to vector<8x1xf32>
    %34 = math.log %33 : vector<8x1xf32>
    %35 = vector.broadcast %34 : vector<8x1xf32> to vector<8x10xf32>
    %36 = arith.subf %30, %35 : vector<8x10xf32>
    %c0_25 = arith.constant 0 : index
    %c0_26 = arith.constant 0 : index
    %37 = vector.load %arg10[%c0_25, %c0_26] : memref<8x10xf32, #tpu.memory_space<vmem>>, vector<8x10xf32>
    tpu.vector_store %arg10[%c0_25, %c0_26], %36 {strides = array<i32>} : memref<8x10xf32, #tpu.memory_space<vmem>>, vector<8x10xf32>,
    return
  }
  func.func @transform_0(%arg0: i32) -> (i32, i32) {
    %c0_i32 = arith.constant 0 : i32
    %c0_i32_0 = arith.constant 0 : i32
    return %arg0, %c0_i32 : i32, i32
  }
  func.func @transform_1(%arg0: i32) -> (i32, i32) {
    %c0_i32 = arith.constant 0 : i32
    %c0_i32_0 = arith.constant 0 : i32
    %c0_i32_1 = arith.constant 0 : i32
    return %c0_i32, %c0_i32_0 : i32, i32
  }
  func.func @transform_2(%arg0: i32) -> (i32, i32) {
    %c0_i32 = arith.constant 0 : i32
    %c0_i32_0 = arith.constant 0 : i32
    %c0_i32_1 = arith.constant 0 : i32
    return %c0_i32, %c0_i32_0 : i32, i32
  }
  func.func @transform_3(%arg0: i32) -> (i32, i32) {
    %c0_i32 = arith.constant 0 : i32
    %c0_i32_0 = arith.constant 0 : i32
    %c0_i32_1 = arith.constant 0 : i32
    return %c0_i32, %c0_i32_0 : i32, i32
  }
  func.func @transform_4(%arg0: i32) -> (i32, i32) {
    %c0_i32 = arith.constant 0 : i32
    %c0_i32_0 = arith.constant 0 : i32
    %c0_i32_1 = arith.constant 0 : i32
    return %c0_i32, %c0_i32_0 : i32, i32
  }
  func.func @transform_5(%arg0: i32) -> (i32, i32) {
    %c0_i32 = arith.constant 0 : i32
    %c0_i32_0 = arith.constant 0 : i32
    %c0_i32_1 = arith.constant 0 : i32
    return %c0_i32, %c0_i32_0 : i32, i32
  }
  func.func @transform_6(%arg0: i32) -> (i32, i32) {
    %c0_i32 = arith.constant 0 : i32
    %c0_i32_0 = arith.constant 0 : i32
    %c0_i32_1 = arith.constant 0 : i32
    return %c0_i32, %c0_i32_0 : i32, i32
  }
  func.func @transform_7(%arg0: i32) -> (i32, i32) {
    %c0_i32 = arith.constant 0 : i32
    %c0_i32_0 = arith.constant 0 : i32
    %c0_i32_1 = arith.constant 0 : i32
    return %c0_i32, %c0_i32_0 : i32, i32
  }
  func.func @transform_8(%arg0: i32) -> (i32, i32) {
    %c0_i32 = arith.constant 0 : i32
    %c0_i32_0 = arith.constant 0 : i32
    %c0_i32_1 = arith.constant 0 : i32
    return %c0_i32, %c0_i32_0 : i32, i32
  }
  func.func @transform_9(%arg0: i32) -> (i32, i32) {
    %c0_i32 = arith.constant 0 : i32
    %c0_i32_0 = arith.constant 0 : i32
    return %arg0, %c0_i32 : i32, i32
  }
}

</mosaic_0001>

<llo_original>
// kernel: net_forward.1
$region0: #{net_forward.1}
  #allocation0 [shape = 'u32[]', space=smem, size = 0x4, offset = 0x4, fixed_abs, tag = 'smem constant byte address 0x4 - core index']
  #allocation1 [shape = 'u32[144,128]{1,0:T(1,128)}', space=vmem, size = 0x12000, scoped, tag = 'internal scratch']
  %s0 = inlined_call_operand.vmem [shape: f32[8,784], index: 0, kind: input, shape index: {}]
  %s1 = inlined_call_operand.vmem [shape: f32[784,64], index: 1, kind: input, shape index: {}]
  %s2 = inlined_call_operand.vmem [shape: f32[1,64], index: 2, kind: input, shape index: {}]
  %s3 = inlined_call_operand.vmem [shape: f32[64,64], index: 3, kind: input, shape index: {}]
  %s4 = inlined_call_operand.vmem [shape: f32[1,64], index: 4, kind: input, shape index: {}]
  %s5 = inlined_call_operand.vmem [shape: f32[64,64], index: 5, kind: input, shape index: {}]
  %s6 = inlined_call_operand.vmem [shape: f32[1,64], index: 6, kind: input, shape index: {}]
  %s7 = inlined_call_operand.vmem [shape: f32[64,10], index: 7, kind: input, shape index: {}]
  %s8 = inlined_call_operand.vmem [shape: f32[1,10], index: 8, kind: input, shape index: {}]
  %s9 = inlined_call_operand.hbm [shape: f32[8,10], index: 9, kind: output, shape index: {}]
  %s10 = sld [smem:[#allocation0]]
  $region46: #{net_forward.1} parent=0
    _
  %s12 = ssub.s32 1, %s10
  %s13 = scalar_select 0, %s12, %s10
  $region1: #{net_forward.1} parent=0
    #allocation2 [shape = 'u8[4096]{0}', space=vmem, size = 0x1000, scoped, tag = 'output window, operand 0, single buffered']
    #allocation3 [shape = 's32[1]{0}', space=sflag, size = 0x4, scoped, tag = 'scoped memory for net_forward.1']
    %14 = vsyncpa [#allocation3], 0
    // Predicated region
    $region2: #{net_forward.1} parent=1 // pred_check
      _
    $region3: #{net_forward.1} parent=1 // pred_check_branch
      %16 = sbr.rel (0) target = $region5
    $region4: #{net_forward.1} parent=1 // pred_region
      _
    $region5: #{net_forward.1} parent=1 // pred_fallthru
      _
    // Predicated region
    $region6: #{net_forward.1} parent=1 // pred_check
      _
    $region7: #{net_forward.1} parent=1 // pred_check_branch
      %18 = sbr.rel (0) target = $region9
    $region8: #{net_forward.1} parent=1 // pred_region
      _
    $region9: #{net_forward.1} parent=1 // pred_fallthru
      _
    // Predicated region
    $region10: #{net_forward.1} parent=1 // pred_check
      _
    $region11: #{net_forward.1} parent=1 // pred_check_branch
      %20 = sbr.rel (0) target = $region13
    $region12: #{net_forward.1} parent=1 // pred_region
      _
    $region13: #{net_forward.1} parent=1 // pred_fallthru
      _
    // Predicated region
    $region14: #{net_forward.1} parent=1 // pred_check
      _
    $region15: #{net_forward.1} parent=1 // pred_check_branch
      %22 = sbr.rel (0) target = $region17
    $region16: #{net_forward.1} parent=1 // pred_region
      _
    $region17: #{net_forward.1} parent=1 // pred_fallthru
      _
    // Predicated region
    $region18: #{net_forward.1} parent=1 // pred_check
      _
    $region19: #{net_forward.1} parent=1 // pred_check_branch
      %24 = sbr.rel (0) target = $region21
    $region20: #{net_forward.1} parent=1 // pred_region
      _
    $region21: #{net_forward.1} parent=1 // pred_fallthru
      _
    // Predicated region
    $region22: #{net_forward.1} parent=1 // pred_check
      _
    $region23: #{net_forward.1} parent=1 // pred_check_branch
      %26 = sbr.rel (0) target = $region25
    $region24: #{net_forward.1} parent=1 // pred_region
      _
    $region25: #{net_forward.1} parent=1 // pred_fallthru
      _
    // Predicated region
    $region26: #{net_forward.1} parent=1 // pred_check
      _
    $region27: #{net_forward.1} parent=1 // pred_check_branch
      %28 = sbr.rel (0) target = $region29
    $region28: #{net_forward.1} parent=1 // pred_region
      _
    $region29: #{net_forward.1} parent=1 // pred_fallthru
      _
    // Predicated region
    $region30: #{net_forward.1} parent=1 // pred_check
      _
    $region31: #{net_forward.1} parent=1 // pred_check_branch
      %30 = sbr.rel (0) target = $region33
    $region32: #{net_forward.1} parent=1 // pred_region
      _
    $region33: #{net_forward.1} parent=1 // pred_fallthru
      _
    // Predicated region
    $region34: #{net_forward.1} parent=1 // pred_check
      _
    $region35: #{net_forward.1} parent=1 // pred_check_branch
      %32 = sbr.rel (0) target = $region37
    $region36: #{net_forward.1} parent=1 // pred_region
      _
    $region37: #{net_forward.1} parent=1 // pred_fallthru
      _
    %v33 = vld [vmem:[%s0] sm:$0xff]
    %v34 = vld [vmem:[%s0 + $0x8] sm:$0xff]
    %v35 = vld [vmem:[%s0 + $0x10] sm:$0xff]
    %v36 = vld [vmem:[%s0 + $0x18] sm:$0xff]
    %v37 = vld [vmem:[%s0 + $0x20] sm:$0xff]
    %v38 = vld [vmem:[%s0 + $0x28] sm:$0xff]
    %v39 = vld [vmem:[%s0 + $0x30] sm:$0xff]
    %v40 = vld [vmem:[%s1] sm:$0xff]
    %v41 = vld [vmem:[%s1 + $0x8] sm:$0xff]
    %v42 = vld [vmem:[%s1 + $0x10] sm:$0xff]
    %v43 = vld [vmem:[%s1 + $0x18] sm:$0xff]
    %v44 = vld [vmem:[%s1 + $0x20] sm:$0xff]
    %v45 = vld [vmem:[%s1 + $0x28] sm:$0xff]
    %v46 = vld [vmem:[%s1 + $0x30] sm:$0xff]
    %v47 = vld [vmem:[%s1 + $0x38] sm:$0xff]
    %v48 = vld [vmem:[%s1 + $0x40] sm:$0xff]
    %v49 = vld [vmem:[%s1 + $0x48] sm:$0xff]
    %v50 = vld [vmem:[%s1 + $0x50] sm:$0xff]
    %v51 = vld [vmem:[%s1 + $0x58] sm:$0xff]
    %v52 = vld [vmem:[%s1 + $0x60] sm:$0xff]
    %v53 = vld [vmem:[%s1 + $0x68] sm:$0xff]
    %v54 = vld [vmem:[%s1 + $0x70] sm:$0xff]
    %v55 = vld [vmem:[%s1 + $0x78] sm:$0xff]
    %v56 = vld [vmem:[%s1 + $0x80] sm:$0xff]
    %v57 = vld [vmem:[%s1 + $0x88] sm:$0xff]
    %v58 = vld [vmem:[%s1 + $0x90] sm:$0xff]
    %v59 = vld [vmem:[%s1 + $0x98] sm:$0xff]
    %v60 = vld [vmem:[%s1 + $0xa0] sm:$0xff]
    %v61 = vld [vmem:[%s1 + $0xa8] sm:$0xff]
    %v62 = vld [vmem:[%s1 + $0xb0] sm:$0xff]
    %v63 = vld [vmem:[%s1 + $0xb8] sm:$0xff]
    %v64 = vld [vmem:[%s1 + $0xc0] sm:$0xff]
    %v65 = vld [vmem:[%s1 + $0xc8] sm:$0xff]
    %v66 = vld [vmem:[%s1 + $0xd0] sm:$0xff]
    %v67 = vld [vmem:[%s1 + $0xd8] sm:$0xff]
    %v68 = vld [vmem:[%s1 + $0xe0] sm:$0xff]
    %v69 = vld [vmem:[%s1 + $0xe8] sm:$0xff]
    %v70 = vld [vmem:[%s1 + $0xf0] sm:$0xff]
    %v71 = vld [vmem:[%s1 + $0xf8] sm:$0xff]
    %v72 = vld [vmem:[%s1 + $0x100] sm:$0xff]
    %v73 = vld [vmem:[%s1 + $0x108] sm:$0xff]
    %v74 = vld [vmem:[%s1 + $0x110] sm:$0xff]
    %v75 = vld [vmem:[%s1 + $0x118] sm:$0xff]
    %v76 = vld [vmem:[%s1 + $0x120] sm:$0xff]
    %v77 = vld [vmem:[%s1 + $0x128] sm:$0xff]
    %v78 = vld [vmem:[%s1 + $0x130] sm:$0xff]
    %v79 = vld [vmem:[%s1 + $0x138] sm:$0xff]
    %v80 = vld [vmem:[%s1 + $0x140] sm:$0xff]
    %v81 = vld [vmem:[%s1 + $0x148] sm:$0xff]
    %v82 = vld [vmem:[%s1 + $0x150] sm:$0xff]
    %v83 = vld [vmem:[%s1 + $0x158] sm:$0xff]
    %v84 = vld [vmem:[%s1 + $0x160] sm:$0xff]
    %v85 = vld [vmem:[%s1 + $0x168] sm:$0xff]
    %v86 = vld [vmem:[%s1 + $0x170] sm:$0xff]
    %v87 = vld [vmem:[%s1 + $0x178] sm:$0xff]
    %v88 = vld [vmem:[%s1 + $0x180] sm:$0xff]
    %v89 = vld [vmem:[%s1 + $0x188] sm:$0xff]
    %v90 = vld [vmem:[%s1 + $0x190] sm:$0xff]
    %v91 = vld [vmem:[%s1 + $0x198] sm:$0xff]
    %v92 = vld [vmem:[%s1 + $0x1a0] sm:$0xff]
    %v93 = vld [vmem:[%s1 + $0x1a8] sm:$0xff]
    %v94 = vld [vmem:[%s1 + $0x1b0] sm:$0xff]
    %v95 = vld [vmem:[%s1 + $0x1b8] sm:$0xff]
    %v96 = vld [vmem:[%s1 + $0x1c0] sm:$0xff]
    %v97 = vld [vmem:[%s1 + $0x1c8] sm:$0xff]
    %v98 = vld [vmem:[%s1 + $0x1d0] sm:$0xff]
    %v99 = vld [vmem:[%s1 + $0x1d8] sm:$0xff]
    %v100 = vld [vmem:[%s1 + $0x1e0] sm:$0xff]
    %v101 = vld [vmem:[%s1 + $0x1e8] sm:$0xff]
    %v102 = vld [vmem:[%s1 + $0x1f0] sm:$0xff]
    %v103 = vld [vmem:[%s1 + $0x1f8] sm:$0xff]
    %v104 = vld [vmem:[%s1 + $0x200] sm:$0xff]
    %v105 = vld [vmem:[%s1 + $0x208] sm:$0xff]
    %v106 = vld [vmem:[%s1 + $0x210] sm:$0xff]
    %v107 = vld [vmem:[%s1 + $0x218] sm:$0xff]
    %v108 = vld [vmem:[%s1 + $0x220] sm:$0xff]
    %v109 = vld [vmem:[%s1 + $0x228] sm:$0xff]
    %v110 = vld [vmem:[%s1 + $0x230] sm:$0xff]
    %v111 = vld [vmem:[%s1 + $0x238] sm:$0xff]
    %v112 = vld [vmem:[%s1 + $0x240] sm:$0xff]
    %v113 = vld [vmem:[%s1 + $0x248] sm:$0xff]
    %v114 = vld [vmem:[%s1 + $0x250] sm:$0xff]
    %v115 = vld [vmem:[%s1 + $0x258] sm:$0xff]
    %v116 = vld [vmem:[%s1 + $0x260] sm:$0xff]
    %v117 = vld [vmem:[%s1 + $0x268] sm:$0xff]
    %v118 = vld [vmem:[%s1 + $0x270] sm:$0xff]
    %v119 = vld [vmem:[%s1 + $0x278] sm:$0xff]
    %v120 = vld [vmem:[%s1 + $0x280] sm:$0xff]
    %v121 = vld [vmem:[%s1 + $0x288] sm:$0xff]
    %v122 = vld [vmem:[%s1 + $0x290] sm:$0xff]
    %v123 = vld [vmem:[%s1 + $0x298] sm:$0xff]
    %v124 = vld [vmem:[%s1 + $0x2a0] sm:$0xff]
    %v125 = vld [vmem:[%s1 + $0x2a8] sm:$0xff]
    %v126 = vld [vmem:[%s1 + $0x2b0] sm:$0xff]
    %v127 = vld [vmem:[%s1 + $0x2b8] sm:$0xff]
    %v128 = vld [vmem:[%s1 + $0x2c0] sm:$0xff]
    %v129 = vld [vmem:[%s1 + $0x2c8] sm:$0xff]
    %v130 = vld [vmem:[%s1 + $0x2d0] sm:$0xff]
    %v131 = vld [vmem:[%s1 + $0x2d8] sm:$0xff]
    %v132 = vld [vmem:[%s1 + $0x2e0] sm:$0xff]
    %v133 = vld [vmem:[%s1 + $0x2e8] sm:$0xff]
    %v134 = vld [vmem:[%s1 + $0x2f0] sm:$0xff]
    %v135 = vld [vmem:[%s1 + $0x2f8] sm:$0xff]
    %v136 = vld [vmem:[%s1 + $0x300] sm:$0xff]
    %v137 = vld [vmem:[%s1 + $0x308] sm:$0xff]
    %v138 = vld [vmem:[%s2] sm:$0x1]
    %v140 = vlaneseq
    %v141 = vshrl.u32 %v140, 7
    %v142 = vsub.s32 0, %v141
    %v143 = vrot.slane %v138, %v142
    %vm145 = vcmask 130048
    %v147 = vsel %vm145, %v39, 0
    %149 = vmatprep.subr.mxu0 0.0
    %150 = vmatpush1.msra.mxu0 %v40
    %151 = vmatprep.subr.mxu0 0.0
    %152 = vmatpush1.msra.mxu0 %v41
    %153 = vmatprep.subr.mxu0 0.0
    %154 = vmatpush1.msra.mxu0 %v42
    %155 = vmatprep.subr.mxu0 0.0
    %156 = vmatpush1.msra.mxu0 %v43
    %157 = vmatprep.subr.mxu0 0.0
    %158 = vmatpush1.msra.mxu0 %v44
    %159 = vmatprep.subr.mxu0 0.0
    %160 = vmatpush1.msra.mxu0 %v45
    %161 = vmatprep.subr.mxu0 0.0
    %162 = vmatpush1.msra.mxu0 %v46
    %163 = vmatprep.subr.mxu0 0.0
    %164 = vmatpush1.msra.mxu0 %v47
    %165 = vmatprep.subr.mxu0 0.0
    %166 = vmatpush1.msra.mxu0 %v48
    %167 = vmatprep.subr.mxu0 0.0
    %168 = vmatpush1.msra.mxu0 %v49
    %169 = vmatprep.subr.mxu0 0.0
    %170 = vmatpush1.msra.mxu0 %v50
    %171 = vmatprep.subr.mxu0 0.0
    %172 = vmatpush1.msra.mxu0 %v51
    %173 = vmatprep.subr.mxu0 0.0
    %174 = vmatpush1.msra.mxu0 %v52
    %175 = vmatprep.subr.mxu0 0.0
    %176 = vmatpush1.msra.mxu0 %v53
    %177 = vmatprep.subr.mxu0 0.0
    %178 = vmatpush1.msra.mxu0 %v54
    %179 = vmatprep.subr.mxu0 0.0
    %180 = vmatpush1.msra.mxu0 %v55
    %181 = vmatprep.subr.mxu0 0.0
    %182 = vmatpush1.msra.mxu0 %v56
    %183 = vmatprep.subr.mxu0 0.0
    %184 = vmatpush1.msra.mxu0 %v57
    %185 = vmatprep.subr.mxu0 0.0
    %186 = vmatpush1.msra.mxu0 %v58
    %187 = vmatprep.subr.mxu0 0.0
    %188 = vmatpush1.msra.mxu0 %v59
    %189 = vmatprep.subr.mxu0 0.0
    %190 = vmatpush1.msra.mxu0 %v60
    %191 = vmatprep.subr.mxu0 0.0
    %192 = vmatpush1.msra.mxu0 %v61
    %193 = vmatprep.subr.mxu0 0.0
    %194 = vmatpush1.msra.mxu0 %v62
    %195 = vmatprep.subr.mxu0 0.0
    %196 = vmatpush1.msra.mxu0 %v63
    %197 = vmatprep.subr.mxu0 0.0
    %198 = vmatpush1.msra.mxu0 %v64
    %199 = vmatprep.subr.mxu0 0.0
    %200 = vmatpush1.msra.mxu0 %v65
    %201 = vmatprep.subr.mxu0 0.0
    %202 = vmatpush1.msra.mxu0 %v66
    %203 = vmatprep.subr.mxu0 0.0
    %204 = vmatpush1.msra.mxu0 %v67
    %205 = vmatprep.subr.mxu0 0.0
    %206 = vmatpush1.msra.mxu0 %v68
    %207 = vmatprep.subr.mxu0 0.0
    %208 = vmatpush1.msra.mxu0 %v69
    %209 = vmatprep.subr.mxu0 0.0
    %210 = vmatpush1.msra.mxu0 %v70
    %211 = vmatprep.subr.mxu0 0.0
    %212 = vmatpush1.msra.mxu0 %v71
    %213 = vmatprep.mubr.f32.mxu0 %v34
    %214 = vmatmul.mubr.f32.gmra.mrb[0].mxu0 %v33
    %v215 = vpop.f32.mrb[0].mxu0
    %v216 = vadd.f32 %v143, %v215
    %v217 = vpop.f32.mrb[0].mxu0
    %218 = vdwg.mxu0
    %219 = vmatprep.subr.mxu0 0.0
    %220 = vmatpush1.msra.mxu0 %v72
    %221 = vmatprep.subr.mxu0 0.0
    %222 = vmatpush1.msra.mxu0 %v73
    %223 = vmatprep.subr.mxu0 0.0
    %224 = vmatpush1.msra.mxu0 %v74
    %225 = vmatprep.subr.mxu0 0.0
    %226 = vmatpush1.msra.mxu0 %v75
    %227 = vmatprep.subr.mxu0 0.0
    %228 = vmatpush1.msra.mxu0 %v76
    %229 = vmatprep.subr.mxu0 0.0
    %230 = vmatpush1.msra.mxu0 %v77
    %231 = vmatprep.subr.mxu0 0.0
    %232 = vmatpush1.msra.mxu0 %v78
    %233 = vmatprep.subr.mxu0 0.0
    %234 = vmatpush1.msra.mxu0 %v79
    %235 = vmatprep.subr.mxu0 0.0
    %236 = vmatpush1.msra.mxu0 %v80
    %237 = vmatprep.subr.mxu0 0.0
    %238 = vmatpush1.msra.mxu0 %v81
    %239 = vmatprep.subr.mxu0 0.0
    %240 = vmatpush1.msra.mxu0 %v82
    %241 = vmatprep.subr.mxu0 0.0
    %242 = vmatpush1.msra.mxu0 %v83
    %243 = vmatprep.subr.mxu0 0.0
    %244 = vmatpush1.msra.mxu0 %v84
    %245 = vmatprep.subr.mxu0 0.0
    %246 = vmatpush1.msra.mxu0 %v85
    %247 = vmatprep.subr.mxu0 0.0
    %248 = vmatpush1.msra.mxu0 %v86
    %249 = vmatprep.subr.mxu0 0.0
    %250 = vmatpush1.msra.mxu0 %v87
    %251 = vmatprep.subr.mxu0 0.0
    %252 = vmatpush1.msra.mxu0 %v88
    %253 = vmatprep.subr.mxu0 0.0
    %254 = vmatpush1.msra.mxu0 %v89
    %255 = vmatprep.subr.mxu0 0.0
    %256 = vmatpush1.msra.mxu0 %v90
    %257 = vmatprep.subr.mxu0 0.0
    %258 = vmatpush1.msra.mxu0 %v91
    %259 = vmatprep.subr.mxu0 0.0
    %260 = vmatpush1.msra.mxu0 %v92
    %261 = vmatprep.subr.mxu0 0.0
    %262 = vmatpush1.msra.mxu0 %v93
    %263 = vmatprep.subr.mxu0 0.0
    %264 = vmatpush1.msra.mxu0 %v94
    %265 = vmatprep.subr.mxu0 0.0
    %266 = vmatpush1.msra.mxu0 %v95
    %267 = vmatprep.subr.mxu0 0.0
    %268 = vmatpush1.msra.mxu0 %v96
    %269 = vmatprep.subr.mxu0 0.0
    %270 = vmatpush1.msra.mxu0 %v97
    %271 = vmatprep.subr.mxu0 0.0
    %272 = vmatpush1.msra.mxu0 %v98
    %273 = vmatprep.subr.mxu0 0.0
    %274 = vmatpush1.msra.mxu0 %v99
    %275 = vmatprep.subr.mxu0 0.0
    %276 = vmatpush1.msra.mxu0 %v100
    %277 = vmatprep.subr.mxu0 0.0
    %278 = vmatpush1.msra.mxu0 %v101
    %279 = vmatprep.subr.mxu0 0.0
    %280 = vmatpush1.msra.mxu0 %v102
    %281 = vmatprep.subr.mxu0 0.0
    %282 = vmatpush1.msra.mxu0 %v103
    %283 = vmatprep.mubr.f32.mxu0 %v36
    %284 = vmatmul.mubr.f32.gmra.mrb[0].mxu0 %v35
    %v285 = vpop.f32.mrb[0].mxu0
    %v286 = vadd.f32 %v216, %v285
    %v287 = vpop.f32.mrb[0].mxu0
    %288 = vdwg.mxu0
    %289 = vmatprep.subr.mxu0 0.0
    %290 = vmatpush1.msra.mxu0 %v104
    %291 = vmatprep.subr.mxu0 0.0
    %292 = vmatpush1.msra.mxu0 %v105
    %293 = vmatprep.subr.mxu0 0.0
    %294 = vmatpush1.msra.mxu0 %v106
    %295 = vmatprep.subr.mxu0 0.0
    %296 = vmatpush1.msra.mxu0 %v107
    %297 = vmatprep.subr.mxu0 0.0
    %298 = vmatpush1.msra.mxu0 %v108
    %299 = vmatprep.subr.mxu0 0.0
    %300 = vmatpush1.msra.mxu0 %v109
    %301 = vmatprep.subr.mxu0 0.0
    %302 = vmatpush1.msra.mxu0 %v110
    %303 = vmatprep.subr.mxu0 0.0
    %304 = vmatpush1.msra.mxu0 %v111
    %305 = vmatprep.subr.mxu0 0.0
    %306 = vmatpush1.msra.mxu0 %v112
    %307 = vmatprep.subr.mxu0 0.0
    %308 = vmatpush1.msra.mxu0 %v113
    %309 = vmatprep.subr.mxu0 0.0
    %310 = vmatpush1.msra.mxu0 %v114
    %311 = vmatprep.subr.mxu0 0.0
    %312 = vmatpush1.msra.mxu0 %v115
    %313 = vmatprep.subr.mxu0 0.0
    %314 = vmatpush1.msra.mxu0 %v116
    %315 = vmatprep.subr.mxu0 0.0
    %316 = vmatpush1.msra.mxu0 %v117
    %317 = vmatprep.subr.mxu0 0.0
    %318 = vmatpush1.msra.mxu0 %v118
    %319 = vmatprep.subr.mxu0 0.0
    %320 = vmatpush1.msra.mxu0 %v119
    %321 = vmatprep.subr.mxu0 0.0
    %322 = vmatpush1.msra.mxu0 %v120
    %323 = vmatprep.subr.mxu0 0.0
    %324 = vmatpush1.msra.mxu0 %v121
    %325 = vmatprep.subr.mxu0 0.0
    %326 = vmatpush1.msra.mxu0 %v122
    %327 = vmatprep.subr.mxu0 0.0
    %328 = vmatpush1.msra.mxu0 %v123
    %329 = vmatprep.subr.mxu0 0.0
    %330 = vmatpush1.msra.mxu0 %v124
    %331 = vmatprep.subr.mxu0 0.0
    %332 = vmatpush1.msra.mxu0 %v125
    %333 = vmatprep.subr.mxu0 0.0
    %334 = vmatpush1.msra.mxu0 %v126
    %335 = vmatprep.subr.mxu0 0.0
    %336 = vmatpush1.msra.mxu0 %v127
    %337 = vmatprep.subr.mxu0 0.0
    %338 = vmatpush1.msra.mxu0 %v128
    %339 = vmatprep.subr.mxu0 0.0
    %340 = vmatpush1.msra.mxu0 %v129
    %341 = vmatprep.subr.mxu0 0.0
    %342 = vmatpush1.msra.mxu0 %v130
    %343 = vmatprep.subr.mxu0 0.0
    %344 = vmatpush1.msra.mxu0 %v131
    %345 = vmatprep.subr.mxu0 0.0
    %346 = vmatpush1.msra.mxu0 %v132
    %347 = vmatprep.subr.mxu0 0.0
    %348 = vmatpush1.msra.mxu0 %v133
    %349 = vmatprep.subr.mxu0 0.0
    %350 = vmatpush1.msra.mxu0 %v134
    %351 = vmatprep.subr.mxu0 0.0
    %352 = vmatpush1.msra.mxu0 %v135
    %353 = vmatprep.mubr.f32.mxu0 %v38
    %354 = vmatmul.mubr.f32.gmra.mrb[0].mxu0 %v37
    %v355 = vpop.f32.mrb[0].mxu0
    %v356 = vadd.f32 %v286, %v355
    %v357 = vpop.f32.mrb[0].mxu0
    %358 = vdwg.mxu0
    %359 = vmatprep.subr.mxu0 0.0
    %360 = vmatpush1.msra.mxu0 %v136
    %361 = vmatprep.subr.mxu0 0.0
    %362 = vmatpush1.msra.mxu0 %v137
    %363 = vmatprep.subr.mxu0 0.0
    %364 = vmatpush1.msra.mxu0 0.0
    %365 = vmatprep.subr.mxu0 0.0
    %366 = vmatpush1.msra.mxu0 0.0
    %367 = vmatprep.subr.mxu0 0.0
    %368 = vmatpush1.msra.mxu0 0.0
    %369 = vmatprep.subr.mxu0 0.0
    %370 = vmatpush1.msra.mxu0 0.0
    %371 = vmatprep.subr.mxu0 0.0
    %372 = vmatpush1.msra.mxu0 0.0
    %373 = vmatprep.subr.mxu0 0.0
    %374 = vmatpush1.msra.mxu0 0.0
    %375 = vmatprep.subr.mxu0 0.0
    %376 = vmatpush1.msra.mxu0 0.0
    %377 = vmatprep.subr.mxu0 0.0
    %378 = vmatpush1.msra.mxu0 0.0
    %379 = vmatprep.subr.mxu0 0.0
    %380 = vmatpush1.msra.mxu0 0.0
    %381 = vmatprep.subr.mxu0 0.0
    %382 = vmatpush1.msra.mxu0 0.0
    %383 = vmatprep.subr.mxu0 0.0
    %384 = vmatpush1.msra.mxu0 0.0
    %385 = vmatprep.subr.mxu0 0.0
    %386 = vmatpush1.msra.mxu0 0.0
    %387 = vmatprep.subr.mxu0 0.0
    %388 = vmatpush1.msra.mxu0 0.0
    %389 = vmatprep.subr.mxu0 0.0
    %390 = vmatpush1.msra.mxu0 0.0
    %391 = vmatprep.subr.mxu0 0.0
    %392 = vmatpush1.msra.mxu0 0.0
    %393 = vmatprep.subr.mxu0 0.0
    %394 = vmatpush1.msra.mxu0 0.0
    %395 = vmatprep.subr.mxu0 0.0
    %396 = vmatpush1.msra.mxu0 0.0
    %397 = vmatprep.subr.mxu0 0.0
    %398 = vmatpush1.msra.mxu0 0.0
    %399 = vmatprep.subr.mxu0 0.0
    %400 = vmatpush1.msra.mxu0 0.0
    %401 = vmatprep.subr.mxu0 0.0
    %402 = vmatpush1.msra.mxu0 0.0
    %403 = vmatprep.subr.mxu0 0.0
    %404 = vmatpush1.msra.mxu0 0.0
    %405 = vmatprep.subr.mxu0 0.0
    %406 = vmatpush1.msra.mxu0 0.0
    %407 = vmatprep.subr.mxu0 0.0
    %408 = vmatpush1.msra.mxu0 0.0
    %409 = vmatprep.subr.mxu0 0.0
    %410 = vmatpush1.msra.mxu0 0.0
    %411 = vmatprep.subr.mxu0 0.0
    %412 = vmatpush1.msra.mxu0 0.0
    %413 = vmatprep.subr.mxu0 0.0
    %414 = vmatpush1.msra.mxu0 0.0
    %415 = vmatprep.subr.mxu0 0.0
    %416 = vmatpush1.msra.mxu0 0.0
    %417 = vmatprep.subr.mxu0 0.0
    %418 = vmatpush1.msra.mxu0 0.0
    %419 = vmatprep.subr.mxu0 0.0
    %420 = vmatpush1.msra.mxu0 0.0
    %421 = vmatprep.subr.mxu0 0.0
    %422 = vmatpush1.msra.mxu0 0.0
    %423 = vmatprep.mubr.f32.mxu0 0.0
    %424 = vmatmul.mubr.f32.gmra.mrb[0].mxu0 %v147
    %v425 = vpop.f32.mrb[0].mxu0
    %v426 = vadd.f32 %v356, %v425
    %v427 = vpop.f32.mrb[0].mxu0
    %428 = vdwg.mxu0
    %v429 = vmax.f32 %v426, 0.0
    %v430 = vld [vmem:[%s3] sm:$0xff]
    %v431 = vld [vmem:[%s3 + $0x8] sm:$0xff]
    %v432 = vld [vmem:[%s3 + $0x10] sm:$0xff]
    %v433 = vld [vmem:[%s3 + $0x18] sm:$0xff]
    %v434 = vld [vmem:[%s3 + $0x20] sm:$0xff]
    %v435 = vld [vmem:[%s3 + $0x28] sm:$0xff]
    %v436 = vld [vmem:[%s3 + $0x30] sm:$0xff]
    %v437 = vld [vmem:[%s3 + $0x38] sm:$0xff]
    %v438 = vld [vmem:[%s4] sm:$0x1]
    %v440 = vlaneseq
    %v441 = vshrl.u32 %v440, 7
    %v442 = vsub.s32 0, %v441
    %v443 = vrot.slane %v438, %v442
    %vm445 = vcmask 523264
    %v447 = vsel %vm445, %v429, 0
    %449 = vmatprep.subr.mxu0 0.0
    %450 = vmatpush1.msra.mxu0 %v430
    %451 = vmatprep.subr.mxu0 0.0
    %452 = vmatpush1.msra.mxu0 %v431
    %453 = vmatprep.subr.mxu0 0.0
    %454 = vmatpush1.msra.mxu0 %v432
    %455 = vmatprep.subr.mxu0 0.0
    %456 = vmatpush1.msra.mxu0 %v433
    %457 = vmatprep.subr.mxu0 0.0
    %458 = vmatpush1.msra.mxu0 %v434
    %459 = vmatprep.subr.mxu0 0.0
    %460 = vmatpush1.msra.mxu0 %v435
    %461 = vmatprep.subr.mxu0 0.0
    %462 = vmatpush1.msra.mxu0 %v436
    %463 = vmatprep.subr.mxu0 0.0
    %464 = vmatpush1.msra.mxu0 %v437
    %465 = vmatprep.subr.mxu0 0.0
    %466 = vmatpush1.msra.mxu0 0.0
    %467 = vmatprep.subr.mxu0 0.0
    %468 = vmatpush1.msra.mxu0 0.0
    %469 = vmatprep.subr.mxu0 0.0
    %470 = vmatpush1.msra.mxu0 0.0
    %471 = vmatprep.subr.mxu0 0.0
    %472 = vmatpush1.msra.mxu0 0.0
    %473 = vmatprep.subr.mxu0 0.0
    %474 = vmatpush1.msra.mxu0 0.0
    %475 = vmatprep.subr.mxu0 0.0
    %476 = vmatpush1.msra.mxu0 0.0
    %477 = vmatprep.subr.mxu0 0.0
    %478 = vmatpush1.msra.mxu0 0.0
    %479 = vmatprep.subr.mxu0 0.0
    %480 = vmatpush1.msra.mxu0 0.0
    %481 = vmatprep.subr.mxu0 0.0
    %482 = vmatpush1.msra.mxu0 0.0
    %483 = vmatprep.subr.mxu0 0.0
    %484 = vmatpush1.msra.mxu0 0.0
    %485 = vmatprep.subr.mxu0 0.0
    %486 = vmatpush1.msra.mxu0 0.0
    %487 = vmatprep.subr.mxu0 0.0
    %488 = vmatpush1.msra.mxu0 0.0
    %489 = vmatprep.subr.mxu0 0.0
    %490 = vmatpush1.msra.mxu0 0.0
    %491 = vmatprep.subr.mxu0 0.0
    %492 = vmatpush1.msra.mxu0 0.0
    %493 = vmatprep.subr.mxu0 0.0
    %494 = vmatpush1.msra.mxu0 0.0
    %495 = vmatprep.subr.mxu0 0.0
    %496 = vmatpush1.msra.mxu0 0.0
    %497 = vmatprep.subr.mxu0 0.0
    %498 = vmatpush1.msra.mxu0 0.0
    %499 = vmatprep.subr.mxu0 0.0
    %500 = vmatpush1.msra.mxu0 0.0
    %501 = vmatprep.subr.mxu0 0.0
    %502 = vmatpush1.msra.mxu0 0.0
    %503 = vmatprep.subr.mxu0 0.0
    %504 = vmatpush1.msra.mxu0 0.0
    %505 = vmatprep.subr.mxu0 0.0
    %506 = vmatpush1.msra.mxu0 0.0
    %507 = vmatprep.subr.mxu0 0.0
    %508 = vmatpush1.msra.mxu0 0.0
    %509 = vmatprep.subr.mxu0 0.0
    %510 = vmatpush1.msra.mxu0 0.0
    %511 = vmatprep.subr.mxu0 0.0
    %512 = vmatpush1.msra.mxu0 0.0
    %513 = vmatprep.mubr.f32.mxu0 0.0
    %514 = vmatmul.mubr.f32.gmra.mrb[0].mxu0 %v447
    %v515 = vpop.f32.mrb[0].mxu0
    %v516 = vadd.f32 %v443, %v515
    %v517 = vpop.f32.mrb[0].mxu0
    %518 = vdwg.mxu0
    %v519 = vmax.f32 %v516, 0.0
    %v520 = vld [vmem:[%s5] sm:$0xff]
    %v521 = vld [vmem:[%s5 + $0x8] sm:$0xff]
    %v522 = vld [vmem:[%s5 + $0x10] sm:$0xff]
    %v523 = vld [vmem:[%s5 + $0x18] sm:$0xff]
    %v524 = vld [vmem:[%s5 + $0x20] sm:$0xff]
    %v525 = vld [vmem:[%s5 + $0x28] sm:$0xff]
    %v526 = vld [vmem:[%s5 + $0x30] sm:$0xff]
    %v527 = vld [vmem:[%s5 + $0x38] sm:$0xff]
    %v528 = vld [vmem:[%s6] sm:$0x1]
    %v530 = vlaneseq
    %v531 = vshrl.u32 %v530, 7
    %v532 = vsub.s32 0, %v531
    %v533 = vrot.slane %v528, %v532
    %v536 = vsel %vm445, %v519, 0
    %538 = vmatprep.subr.mxu0 0.0
    %539 = vmatpush1.msra.mxu0 %v520
    %540 = vmatprep.subr.mxu0 0.0
    %541 = vmatpush1.msra.mxu0 %v521
    %542 = vmatprep.subr.mxu0 0.0
    %543 = vmatpush1.msra.mxu0 %v522
    %544 = vmatprep.subr.mxu0 0.0
    %545 = vmatpush1.msra.mxu0 %v523
    %546 = vmatprep.subr.mxu0 0.0
    %547 = vmatpush1.msra.mxu0 %v524
    %548 = vmatprep.subr.mxu0 0.0
    %549 = vmatpush1.msra.mxu0 %v525
    %550 = vmatprep.subr.mxu0 0.0
    %551 = vmatpush1.msra.mxu0 %v526
    %552 = vmatprep.subr.mxu0 0.0
    %553 = vmatpush1.msra.mxu0 %v527
    %554 = vmatprep.subr.mxu0 0.0
    %555 = vmatpush1.msra.mxu0 0.0
    %556 = vmatprep.subr.mxu0 0.0
    %557 = vmatpush1.msra.mxu0 0.0
    %558 = vmatprep.subr.mxu0 0.0
    %559 = vmatpush1.msra.mxu0 0.0
    %560 = vmatprep.subr.mxu0 0.0
    %561 = vmatpush1.msra.mxu0 0.0
    %562 = vmatprep.subr.mxu0 0.0
    %563 = vmatpush1.msra.mxu0 0.0
    %564 = vmatprep.subr.mxu0 0.0
    %565 = vmatpush1.msra.mxu0 0.0
    %566 = vmatprep.subr.mxu0 0.0
    %567 = vmatpush1.msra.mxu0 0.0
    %568 = vmatprep.subr.mxu0 0.0
    %569 = vmatpush1.msra.mxu0 0.0
    %570 = vmatprep.subr.mxu0 0.0
    %571 = vmatpush1.msra.mxu0 0.0
    %572 = vmatprep.subr.mxu0 0.0
    %573 = vmatpush1.msra.mxu0 0.0
    %574 = vmatprep.subr.mxu0 0.0
    %575 = vmatpush1.msra.mxu0 0.0
    %576 = vmatprep.subr.mxu0 0.0
    %577 = vmatpush1.msra.mxu0 0.0
    %578 = vmatprep.subr.mxu0 0.0
    %579 = vmatpush1.msra.mxu0 0.0
    %580 = vmatprep.subr.mxu0 0.0
    %581 = vmatpush1.msra.mxu0 0.0
    %582 = vmatprep.subr.mxu0 0.0
    %583 = vmatpush1.msra.mxu0 0.0
    %584 = vmatprep.subr.mxu0 0.0
    %585 = vmatpush1.msra.mxu0 0.0
    %586 = vmatprep.subr.mxu0 0.0
    %587 = vmatpush1.msra.mxu0 0.0
    %588 = vmatprep.subr.mxu0 0.0
    %589 = vmatpush1.msra.mxu0 0.0
    %590 = vmatprep.subr.mxu0 0.0
    %591 = vmatpush1.msra.mxu0 0.0
    %592 = vmatprep.subr.mxu0 0.0
    %593 = vmatpush1.msra.mxu0 0.0
    %594 = vmatprep.subr.mxu0 0.0
    %595 = vmatpush1.msra.mxu0 0.0
    %596 = vmatprep.subr.mxu0 0.0
    %597 = vmatpush1.msra.mxu0 0.0
    %598 = vmatprep.subr.mxu0 0.0
    %599 = vmatpush1.msra.mxu0 0.0
    %600 = vmatprep.subr.mxu0 0.0
    %601 = vmatpush1.msra.mxu0 0.0
    %602 = vmatprep.mubr.f32.mxu0 0.0
    %603 = vmatmul.mubr.f32.gmra.mrb[0].mxu0 %v536
    %v604 = vpop.f32.mrb[0].mxu0
    %v605 = vadd.f32 %v533, %v604
    %v606 = vpop.f32.mrb[0].mxu0
    %607 = vdwg.mxu0
    %v608 = vmax.f32 %v605, 0.0
    %v609 = vld [vmem:[%s7] sm:$0xff]
    %v610 = vld [vmem:[%s7 + $0x8] sm:$0xff]
    %v611 = vld [vmem:[%s7 + $0x10] sm:$0xff]
    %v612 = vld [vmem:[%s7 + $0x18] sm:$0xff]
    %v613 = vld [vmem:[%s7 + $0x20] sm:$0xff]
    %v614 = vld [vmem:[%s7 + $0x28] sm:$0xff]
    %v615 = vld [vmem:[%s7 + $0x30] sm:$0xff]
    %v616 = vld [vmem:[%s7 + $0x38] sm:$0xff]
    %v617 = vld [vmem:[%s8] sm:$0x1]
    %v619 = vlaneseq
    %v620 = vshrl.u32 %v619, 7
    %v621 = vsub.s32 0, %v620
    %v622 = vrot.slane %v617, %v621
    %v625 = vsel %vm445, %v608, 0
    %627 = vmatprep.subr.mxu0 0.0
    %628 = vmatpush1.msra.mxu0 %v609
    %629 = vmatprep.subr.mxu0 0.0
    %630 = vmatpush1.msra.mxu0 %v610
    %631 = vmatprep.subr.mxu0 0.0
    %632 = vmatpush1.msra.mxu0 %v611
    %633 = vmatprep.subr.mxu0 0.0
    %634 = vmatpush1.msra.mxu0 %v612
    %635 = vmatprep.subr.mxu0 0.0
    %636 = vmatpush1.msra.mxu0 %v613
    %637 = vmatprep.subr.mxu0 0.0
    %638 = vmatpush1.msra.mxu0 %v614
    %639 = vmatprep.subr.mxu0 0.0
    %640 = vmatpush1.msra.mxu0 %v615
    %641 = vmatprep.subr.mxu0 0.0
    %642 = vmatpush1.msra.mxu0 %v616
    %643 = vmatprep.subr.mxu0 0.0
    %644 = vmatpush1.msra.mxu0 0.0
    %645 = vmatprep.subr.mxu0 0.0
    %646 = vmatpush1.msra.mxu0 0.0
    %647 = vmatprep.subr.mxu0 0.0
    %648 = vmatpush1.msra.mxu0 0.0
    %649 = vmatprep.subr.mxu0 0.0
    %650 = vmatpush1.msra.mxu0 0.0
    %651 = vmatprep.subr.mxu0 0.0
    %652 = vmatpush1.msra.mxu0 0.0
    %653 = vmatprep.subr.mxu0 0.0
    %654 = vmatpush1.msra.mxu0 0.0
    %655 = vmatprep.subr.mxu0 0.0
    %656 = vmatpush1.msra.mxu0 0.0
    %657 = vmatprep.subr.mxu0 0.0
    %658 = vmatpush1.msra.mxu0 0.0
    %659 = vmatprep.subr.mxu0 0.0
    %660 = vmatpush1.msra.mxu0 0.0
    %661 = vmatprep.subr.mxu0 0.0
    %662 = vmatpush1.msra.mxu0 0.0
    %663 = vmatprep.subr.mxu0 0.0
    %664 = vmatpush1.msra.mxu0 0.0
    %665 = vmatprep.subr.mxu0 0.0
    %666 = vmatpush1.msra.mxu0 0.0
    %667 = vmatprep.subr.mxu0 0.0
    %668 = vmatpush1.msra.mxu0 0.0
    %669 = vmatprep.subr.mxu0 0.0
    %670 = vmatpush1.msra.mxu0 0.0
    %671 = vmatprep.subr.mxu0 0.0
    %672 = vmatpush1.msra.mxu0 0.0
    %673 = vmatprep.subr.mxu0 0.0
    %674 = vmatpush1.msra.mxu0 0.0
    %675 = vmatprep.subr.mxu0 0.0
    %676 = vmatpush1.msra.mxu0 0.0
    %677 = vmatprep.subr.mxu0 0.0
    %678 = vmatpush1.msra.mxu0 0.0
    %679 = vmatprep.subr.mxu0 0.0
    %680 = vmatpush1.msra.mxu0 0.0
    %681 = vmatprep.subr.mxu0 0.0
    %682 = vmatpush1.msra.mxu0 0.0
    %683 = vmatprep.subr.mxu0 0.0
    %684 = vmatpush1.msra.mxu0 0.0
    %685 = vmatprep.subr.mxu0 0.0
    %686 = vmatpush1.msra.mxu0 0.0
    %687 = vmatprep.subr.mxu0 0.0
    %688 = vmatpush1.msra.mxu0 0.0
    %689 = vmatprep.subr.mxu0 0.0
    %690 = vmatpush1.msra.mxu0 0.0
    %691 = vmatprep.mubr.f32.mxu0 0.0
    %692 = vmatmul.mubr.f32.gmra.mrb[0].mxu0 %v625
    %v693 = vpop.f32.mrb[0].mxu0
    %v694 = vadd.f32 %v622, %v693
    %v695 = vpop.f32.mrb[0].mxu0
    %696 = vdwg.mxu0
    %vm697 = vcmask 80896
    %v698 = vsel %vm697, %v694, -inf
    %699 = vmax.xlane.f32.xlu0 %v698
    %v700 = vpop.xlane.xlu0 %699
    %v701 = vsub.f32 %v694, %v700
    %v702 = vmul.f32 %v701, 1.442695
    %v703 = vpow.pop %v702
    %v704 = vsel %vm697, %v703, 0.0
    %705 = vadd.xlane.f32.xlu0 %v704
    %v706 = vpop.xlane.xlu0 %705
    %v707 = vlog2.pop %v706
    %v708 = vmul.f32 %v707, 0.6931472
    %v709 = vsub.f32 %v701, %v708
    %710 = vst.msk [vmem:[#allocation2] sm:$0xff] %vm697, %v709
    // Predicated region
    $region38: #{net_forward.1} parent=1 // pred_check
      _
    $region39: #{net_forward.1} parent=1 // pred_check_branch
      %712 = sbr.rel (0) target = $region41
    $region40: #{net_forward.1} parent=1 // pred_region
      %s714 = ssub.s32 128, 128
      %715 = vsyncadd [#allocation3], %s714
      %s717 = sshll.u32 [#allocation2], 4
      %s718 = int_to_ptr.vmem [resolvable:$true] %s717
      %720 = dma.vmem_to_hbm [thread:$0]  %s718, 128, %s9, [#allocation3]
    $region41: #{net_forward.1} parent=1 // pred_fallthru
      _
    // Predicated region
    $region42: #{net_forward.1} parent=1 // pred_check
      _
    $region43: #{net_forward.1} parent=1 // pred_check_branch
      %722 = sbr.rel (0) target = $region45
    $region44: #{net_forward.1} parent=1 // pred_region
      %723 = dma.done [#allocation3], 128
    $region45: #{net_forward.1} parent=1 // pred_fallthru
      _
    %724 = vsyncpa [#allocation3], 1

</llo_original>
